<compile_context>
chip_gen: v5e
topology: v5e:2x2
jax: 0.10.0
libtpu: 0.0.40
codegen_flags: <defaults>
</compile_context>

<pallas_src>
import functools

import jax
import jax.numpy as jnp
from jax.experimental import pallas as pl
from jax.experimental.pallas import tpu as pltpu

_POOL_CHUNK = 512          # rows summed per chunk (bounds the f32 pooling temp)
_VMEM_SLACK = 8 << 20      # head-room left for compiler scratch


def _vmem_budget_bytes():
    cap = 64 << 20                                   # conservative default (v7x)
    try:
        cap = int(pltpu.get_tpu_info().vmem_capacity_bytes)
    except Exception:
        pass
    return max(cap - _VMEM_SLACK, 16 << 20)


def _chunked_row_sum(x_ref):
    """f32 sum over the sublane (row) axis of a (rows, W) ref, in bounded chunks."""
    rows, W = x_ref.shape
    full = rows // _POOL_CHUNK
    tail = rows - full * _POOL_CHUNK
    acc = jnp.zeros((1, W), jnp.float32)
    if full > 0:
        def body(i, a):
            start = pl.multiple_of(i * _POOL_CHUNK, _POOL_CHUNK)
            xk = x_ref[pl.ds(start, _POOL_CHUNK), :].astype(jnp.float32)
            return a + jnp.sum(xk, axis=0, keepdims=True)
        acc = jax.lax.fori_loop(0, full, body, acc)
    if tail > 0:
        xt = x_ref[pl.ds(full * _POOL_CHUNK, tail), :].astype(jnp.float32)
        acc = acc + jnp.sum(xt, axis=0, keepdims=True)
    return acc                                                    # (1, W) f32


# --------------------------- single-pass kernel ------------------------------
def _se_fused_kernel(counts_ref, x_ref, w1_ref, b1_ref, w2_ref, b2_ref, o_ref):
    # counts_ref: SMEM (B,) int32 (scalar prefetch)
    # x_ref/o_ref: VMEM (rows, W) native dtype (batch dim Squeezed)
    # w1_ref: (H, W) f32, b1_ref: (H, 1) f32, w2_ref: (H, W) f32, b2_ref: (1, W) f32
    b = pl.program_id(0)

    row_sum = _chunked_row_sum(x_ref)                              # (1, W) f32
    inv_n = 1.0 / jnp.maximum(counts_ref[b], 1).astype(jnp.float32)

    # Tiny FC on VPU/XLU; lane-tiled weights absorb the W -> C fold.
    h = jnp.sum(row_sum * w1_ref[...], axis=-1, keepdims=True) * inv_n + b1_ref[...]
    h = jnp.maximum(h, 0.0)                                        # (H, 1)
    g = jnp.sum(h * w2_ref[...], axis=0, keepdims=True) + b2_ref[...]   # (1, W)
    gate = jax.nn.sigmoid(g).astype(o_ref.dtype)

    # Streamed load -> mul -> store in native dtype, lane-dense.
    o_ref[...] = x_ref[...] * gate


# ----------------------------- two-pass kernels ------------------------------
def _se_pool_kernel(x_ref, sum_ref):
    # x_ref: (TR, W) tile; sum_ref: (1, W) f32, resident across the row axis.
    @pl.when(pl.program_id(1) == 0)
    def _():
        sum_ref[...] = jnp.zeros_like(sum_ref)
    sum_ref[...] += _chunked_row_sum(x_ref)


def _se_apply_kernel(x_ref, g_ref, o_ref):
    # x_ref/o_ref: (TR, W) native dtype; g_ref: (1, W) native dtype.
    o_ref[...] = x_ref[...] * g_ref[...]


# -------------------------------- wrapper ------------------------------------
def _pick_packing(N, C):
    """Lane-dense packing: channels padded to Cp, (N, Cp) viewed as (rows, W)."""
    if C >= 128:
        Cp = pl.cdiv(C, 128) * 128
        W = Cp
    else:
        Cp = 1
        while Cp < C:
            Cp *= 2                      # power of two <= 128, so 128 % Cp == 0
        W = 128
    # Widen the lane axis while plenty of packed rows remain (fewer descriptors).
    while W < 512 and (N * Cp) % (2 * W) == 0 and (N * Cp) // (2 * W) >= 16:
        W *= 2
    F = W // Cp
    Np = pl.cdiv(N, F) * F
    rows = (Np * Cp) // W
    return Cp, W, F, Np, rows


def _pack_params(w1, b1, w2, b2, *, Cp, F):
    C, H = w1.shape
    w1f = w1.astype(jnp.float32)
    w2f = w2.astype(jnp.float32)
    b2f = jnp.reshape(b2, (C,)).astype(jnp.float32)
    if Cp != C:
        w1f = jnp.pad(w1f, ((0, Cp - C), (0, 0)))
        w2f = jnp.pad(w2f, ((0, 0), (0, Cp - C)))
        b2f = jnp.pad(b2f, (0, Cp - C))
    w1p = jnp.tile(jnp.transpose(w1f), (1, F))                     # (H, W)
    b1p = jnp.reshape(b1, (H, 1)).astype(jnp.float32)              # (H, 1)
    w2p = jnp.tile(w2f, (1, F))                                    # (H, W)
    b2p = jnp.tile(jnp.reshape(b2f, (1, Cp)), (1, F))              # (1, W)
    return w1p, b1p, w2p, b2p


def _se_single_pass(xp, counts, w1, b1, w2, b2, *, H, Cp, F, vmem_limit):
    B, rows, W = xp.shape
    itemsize = xp.dtype.itemsize
    w1p, b1p, w2p, b2p = _pack_params(w1, b1, w2, b2, Cp=Cp, F=F)
    cost = pl.CostEstimate(
        flops=int(3 * B * rows * W + 4 * B * H * W),
        transcendentals=int(B * W),
        bytes_accessed=int(2 * B * rows * W * itemsize),
    )
    return pl.pallas_call(
        _se_fused_kernel,
        out_shape=jax.ShapeDtypeStruct((B, rows, W), xp.dtype),
        grid_spec=pltpu.PrefetchScalarGridSpec(
            num_scalar_prefetch=1,                    # counts -> SMEM
            grid=(B,),
            in_specs=[
                pl.BlockSpec((pl.Squeezed(), rows, W), lambda b, cnt: (b, 0, 0)),
                pl.BlockSpec((H, W), lambda b, cnt: (0, 0)),
                pl.BlockSpec((H, 1), lambda b, cnt: (0, 0)),
                pl.BlockSpec((H, W), lambda b, cnt: (0, 0)),
                pl.BlockSpec((1, W), lambda b, cnt: (0, 0)),
            ],
            out_specs=pl.BlockSpec((pl.Squeezed(), rows, W), lambda b, cnt: (b, 0, 0)),
        ),
        compiler_params=pltpu.CompilerParams(
            dimension_semantics=("parallel",),
            vmem_limit_bytes=int(vmem_limit),
        ),
        cost_estimate=cost,
    )(counts, xp, w1p, b1p, w2p, b2p)


def _se_two_pass(xp, counts, w1, b1, w2, b2, *, H, Cp, F, budget):
    B, rows, W = xp.shape
    C = w1.shape[0]
    itemsize = xp.dtype.itemsize
    per_row = W * itemsize

    # Row-tile: biggest multiple of 8 whose double-buffered in/out blocks plus
    # the bounded f32 pooling temp fit the per-core VMEM budget.
    tr_cap = (budget - _POOL_CHUNK * W * 4 - (4 << 20)) // (5 * per_row)
    TR = int(min(tr_cap, 8192, max(rows, 8)))
    TR = max(8, (TR // 8) * 8)
    rows_p = ((rows + TR - 1) // TR) * TR
    if rows_p != rows:
        xp = jnp.pad(xp, ((0, 0), (0, rows_p - rows), (0, 0)))
    RT = rows_p // TR

    # --- pass 1: pooled per-lane sums (output-resident accumulator) ---------
    pool_vmem = int(min(2 * TR * per_row + _POOL_CHUNK * W * 4 + (2 << 20), budget))
    sums = pl.pallas_call(
        _se_pool_kernel,
        out_shape=jax.ShapeDtypeStruct((B, 1, W), jnp.float32),
        grid_spec=pltpu.PrefetchScalarGridSpec(
            num_scalar_prefetch=0,
            grid=(B, RT),
            in_specs=[pl.BlockSpec((pl.Squeezed(), TR, W), lambda b, r: (b, r, 0))],
            out_specs=pl.BlockSpec((pl.Squeezed(), 1, W), lambda b, r: (b, 0, 0)),
        ),
        compiler_params=pltpu.CompilerParams(
            dimension_semantics=("parallel", "arbitrary"),
            vmem_limit_bytes=pool_vmem,
        ),
        cost_estimate=pl.CostEstimate(
            flops=int(B * rows_p * W), transcendentals=0,
            bytes_accessed=int(B * rows_p * W * itemsize)),
    )(xp)

    # --- tiny gate math in plain XLA (B x C) ---------------------------------
    lane_sum = sums[:, 0, :]                                       # (B, W)
    ch_sum = lane_sum.reshape(B, F, Cp).sum(axis=1)[:, :C]         # (B, C)
    cnt = jnp.maximum(counts, 1).astype(jnp.float32)
    pooled = ch_sum / cnt[:, None]
    h = jnp.maximum(pooled @ w1.astype(jnp.float32)
                    + jnp.reshape(b1, (1, H)).astype(jnp.float32), 0.0)
    gate_c = jax.nn.sigmoid(h @ w2.astype(jnp.float32)
                            + jnp.reshape(b2, (1, C)).astype(jnp.float32))
    if Cp != C:
        gate_c = jnp.pad(gate_c, ((0, 0), (0, Cp - C)))
    gate = jnp.tile(gate_c, (1, F)).reshape(B, 1, W).astype(xp.dtype)

    # --- pass 2: row-tiled broadcast multiply (both grid axes parallel) ------
    apply_vmem = int(min(5 * TR * per_row + 4 * W * itemsize + (2 << 20), budget))
    out = pl.pallas_call(
        _se_apply_kernel,
        out_shape=jax.ShapeDtypeStruct((B, rows_p, W), xp.dtype),
        grid_spec=pltpu.PrefetchScalarGridSpec(
            num_scalar_prefetch=0,
            grid=(B, RT),
            in_specs=[
                pl.BlockSpec((pl.Squeezed(), TR, W), lambda b, r: (b, r, 0)),
                pl.BlockSpec((pl.Squeezed(), 1, W), lambda b, r: (b, 0, 0)),
            ],
            out_specs=pl.BlockSpec((pl.Squeezed(), TR, W), lambda b, r: (b, r, 0)),
        ),
        compiler_params=pltpu.CompilerParams(
            dimension_semantics=("parallel", "parallel"),
            vmem_limit_bytes=apply_vmem,
        ),
        cost_estimate=pl.CostEstimate(
            flops=int(B * rows_p * W), transcendentals=0,
            bytes_accessed=int(2 * B * rows_p * W * itemsize)),
    )(xp, gate)
    return out


@functools.partial(jax.jit, static_argnames=("force_two_pass",))
def se_layer(x, w1, b1, w2, b2, counts=None, force_two_pass=False):
    """x: (B, N, C) densified sparse features (padded rows must be zero).
    w1: (C, H), b1: (1, H), w2: (H, C), b2: (1, C), counts: (B,) int32."""
    B, N, C = x.shape
    H = w1.shape[1]
    if counts is None:
        counts = jnp.full((B,), N, dtype=jnp.int32)
    counts = counts.astype(jnp.int32)
    itemsize = x.dtype.itemsize

    Cp, W, F, Np, rows = _pick_packing(N, C)

    xp = x
    if Cp != C:
        xp = jnp.pad(xp, ((0, 0), (0, 0), (0, Cp - C)))
    if Np != N:
        xp = jnp.pad(xp, ((0, 0), (0, Np - N), (0, 0)))
    xp = xp.reshape(B, rows, W)

    budget = _vmem_budget_bytes()
    block_bytes = rows * W * itemsize
    param_bytes = 2 * 4 * (2 * H * W + H + W)
    single_need = (5 * block_bytes                 # in/out double-buffered + temp
                   + _POOL_CHUNK * W * 4           # bounded f32 pooling chunk
                   + param_bytes + (2 << 20))

    if (not force_two_pass) and single_need <= budget:
        out = _se_single_pass(xp, counts, w1, b1, w2, b2,
                              H=H, Cp=Cp, F=F,
                              vmem_limit=min(single_need, budget))
    else:
        out = _se_two_pass(xp, counts, w1, b1, w2, b2,
                           H=H, Cp=Cp, F=F, budget=budget)

    out = out[:, :rows, :]
    return out.reshape(B, Np, Cp)[:, :N, :C]


def se_layer_ref(x, w1, b1, w2, b2, counts):
    xf = x.astype(jnp.float32)
    summed = jnp.sum(xf, axis=1)                                   # (B, C)
    pooled = summed / jnp.maximum(counts, 1)[:, None].astype(jnp.float32)
    h = jnp.maximum(pooled @ w1 + jnp.reshape(b1, (1, -1)), 0.0)
    gate = jax.nn.sigmoid(h @ w2 + jnp.reshape(b2, (1, -1)))
    return (xf * gate[:, None, :]).astype(x.dtype)


if __name__ == "__main__":
    key = jax.random.PRNGKey(0)
    kx, kw1, kb1, kw2, kb2 = jax.random.split(key, 5)

    def make_case(B, N, C, reduction, counts_list):
        H = max(C // reduction, 1)
        counts = jnp.array(counts_list, dtype=jnp.int32)
        x = jax.random.normal(kx, (B, N, C), dtype=jnp.float32)
        mask = (jnp.arange(N)[None, :] < counts[:, None]).astype(x.dtype)
        x = x * mask[:, :, None]          # padded points must be zero
        w1 = jax.random.normal(kw1, (C, H), dtype=jnp.float32) * 0.1
        b1 = jax.random.normal(kb1, (1, H), dtype=jnp.float32) * 0.1
        w2 = jax.random.normal(kw2, (H, C), dtype=jnp.float32) * 0.1
        b2 = jax.random.normal(kb2, (1, C), dtype=jnp.float32) * 0.1
        return x, w1, b1, w2, b2, counts

    # SELayer(channel=32, reduction=16) -> hidden = 2 (module config).
    case1 = make_case(2, 64, 32, 16, [64, 64])
    # Lane-padding path (C=48 -> 64 lanes) with ragged per-batch counts.
    case2 = make_case(2, 50, 48, 16, [50, 37])

    ok = True
    for (x, w1, b1, w2, b2, counts) in (case1, case2):
        ref = se_layer_ref(x, w1, b1, w2, b2, counts)
        for two_pass in (False, True):      # exercise both the fused and tiled paths
            out = jax.block_until_ready(
                se_layer(x, w1, b1, w2, b2, counts, force_two_pass=two_pass))
            ok = ok and bool(jnp.allclose(out, ref, atol=1e-5, rtol=1e-5))
    assert ok, "mismatch vs reference"

    print("KERNEL_OK")
</pallas_src>

<mosaic_0001>
module attributes {stable_mosaic.version = 11 : i64} {
  func.func @_se_fused_kernel(%arg0: i32, %arg1: memref<2xi32, #tpu.memory_space<smem>>, %arg2: memref<1x16x128xf32, #tpu.memory_space<vmem>>, %arg3: memref<2x128xf32, #tpu.memory_space<vmem>>, %arg4: memref<2x1xf32, #tpu.memory_space<vmem>>, %arg5: memref<2x128xf32, #tpu.memory_space<vmem>>, %arg6: memref<1x128xf32, #tpu.memory_space<vmem>>, %arg7: memref<1x16x128xf32, #tpu.memory_space<vmem>>) attributes {dimension_semantics = [#tpu.dimension_semantics<parallel>], iteration_bounds = array<i64: 2>, scalar_prefetch = 1 : i64, scratch_operands = 0 : i64, tpu.core_type = #tpu.core_type<tc>, window_params = [{transform_indices = @transform_0, window_bounds = array<i64: 1, 16, 128>}, {pipeline_mode = #tpu.pipeline_mode<synchronous>, transform_indices = @transform_1, window_bounds = array<i64: 2, 128>}, {pipeline_mode = #tpu.pipeline_mode<synchronous>, transform_indices = @transform_2, window_bounds = array<i64: 2, 1>}, {pipeline_mode = #tpu.pipeline_mode<synchronous>, transform_indices = @transform_3, window_bounds = array<i64: 2, 128>}, {pipeline_mode = #tpu.pipeline_mode<synchronous>, transform_indices = @transform_4, window_bounds = array<i64: 1, 128>}, {transform_indices = @transform_5, window_bounds = array<i64: 1, 16, 128>}]} {
    %cst = arith.constant 0.000000e+00 : f32
    %0 = vector.broadcast %cst : f32 to vector<1x128xf32>
    %c0 = arith.constant 0 : index
    %c0_0 = arith.constant 0 : index
    %c0_1 = arith.constant 0 : index
    %1 = vector.load %arg2[%c0, %c0_0, %c0_1] : memref<1x16x128xf32, #tpu.memory_space<vmem>>, vector<1x16x128xf32>
    %2 = vector.shape_cast %1 : vector<1x16x128xf32> to vector<16x128xf32>
    %cst_2 = arith.constant dense<0.000000e+00> : vector<128xf32>
    %3 = vector.multi_reduction <add>, %2, %cst_2 [0] : vector<16x128xf32> to vector<128xf32>
    %4 = vector.shape_cast %3 : vector<128xf32> to vector<1x128xf32>
    %5 = arith.addf %0, %4 : vector<1x128xf32>
    %6 = arith.index_cast %arg0 : i32 to index
    %7 = memref.load %arg1[%6] : memref<2xi32, #tpu.memory_space<smem>>
    %c1_i32 = arith.constant 1 : i32
    %8 = arith.maxsi %7, %c1_i32 : i32
    %9 = arith.sitofp %8 : i32 to f32
    %cst_3 = arith.constant 1.000000e+00 : f32
    %10 = arith.divf %cst_3, %9 : f32
    %c0_4 = arith.constant 0 : index
    %c0_5 = arith.constant 0 : index
    %11 = vector.load %arg3[%c0_4, %c0_5] : memref<2x128xf32, #tpu.memory_space<vmem>>, vector<2x128xf32>
    %12 = vector.broadcast %5 : vector<1x128xf32> to vector<2x128xf32>
    %13 = arith.mulf %12, %11 : vector<2x128xf32>
    %cst_6 = arith.constant dense<0.000000e+00> : vector<2xf32>
    %14 = vector.multi_reduction <add>, %13, %cst_6 [1] : vector<2x128xf32> to vector<2xf32>
    %15 = vector.shape_cast %14 : vector<2xf32> to vector<2x1xf32>
    %16 = vector.broadcast %10 : f32 to vector<2x1xf32>
    %17 = arith.mulf %15, %16 : vector<2x1xf32>
    %c0_7 = arith.constant 0 : index
    %c0_8 = arith.constant 0 : index
    %18 = vector.load %arg4[%c0_7, %c0_8] : memref<2x1xf32, #tpu.memory_space<vmem>>, vector<2x1xf32>
    %19 = arith.addf %17, %18 : vector<2x1xf32>
    %cst_9 = arith.constant 0.000000e+00 : f32
    %20 = vector.broadcast %cst_9 : f32 to vector<2x1xf32>
    %21 = arith.maximumf %19, %20 : vector<2x1xf32>
    %c0_10 = arith.constant 0 : index
    %c0_11 = arith.constant 0 : index
    %22 = vector.load %arg5[%c0_10, %c0_11] : memref<2x128xf32, #tpu.memory_space<vmem>>, vector<2x128xf32>
    %23 = vector.broadcast %21 : vector<2x1xf32> to vector<2x128xf32>
    %24 = arith.mulf %23, %22 : vector<2x128xf32>
    %cst_12 = arith.constant dense<0.000000e+00> : vector<128xf32>
    %25 = vector.multi_reduction <add>, %24, %cst_12 [0] : vector<2x128xf32> to vector<128xf32>
    %26 = vector.shape_cast %25 : vector<128xf32> to vector<1x128xf32>
    %c0_13 = arith.constant 0 : index
    %c0_14 = arith.constant 0 : index
    %27 = vector.load %arg6[%c0_13, %c0_14] : memref<1x128xf32, #tpu.memory_space<vmem>>, vector<1x128xf32>
    %28 = arith.addf %26, %27 : vector<1x128xf32>
    %29 = arith.negf %28 : vector<1x128xf32>
    %30 = math.exp %29 : vector<1x128xf32>
    %cst_15 = arith.constant 1.000000e+00 : f32
    %31 = vector.broadcast %cst_15 : f32 to vector<1x128xf32>
    %32 = arith.addf %31, %30 : vector<1x128xf32>
    %33 = arith.divf %31, %32 : vector<1x128xf32>
    %c0_16 = arith.constant 0 : index
    %c0_17 = arith.constant 0 : index
    %c0_18 = arith.constant 0 : index
    %34 = vector.load %arg2[%c0_16, %c0_17, %c0_18] : memref<1x16x128xf32, #tpu.memory_space<vmem>>, vector<1x16x128xf32>
    %35 = vector.shape_cast %34 : vector<1x16x128xf32> to vector<16x128xf32>
    %36 = vector.broadcast %33 : vector<1x128xf32> to vector<16x128xf32>
    %37 = arith.mulf %35, %36 : vector<16x128xf32>
    %c0_19 = arith.constant 0 : index
    %c0_20 = arith.constant 0 : index
    %c0_21 = arith.constant 0 : index
    %38 = vector.load %arg7[%c0_19, %c0_20, %c0_21] : memref<1x16x128xf32, #tpu.memory_space<vmem>>, vector<1x16x128xf32>
    %39 = vector.shape_cast %38 : vector<1x16x128xf32> to vector<16x128xf32>
    %40 = vector.shape_cast %37 : vector<16x128xf32> to vector<1x16x128xf32>
    tpu.vector_store %arg7[%c0_19, %c0_20, %c0_21], %40 {strides = array<i32>} : memref<1x16x128xf32, #tpu.memory_space<vmem>>, vector<1x16x128xf32>,
    return
  }
  func.func @transform_0(%arg0: i32, %arg1: memref<2xi32, #tpu.memory_space<smem>>) -> (i32, i32, i32) {
    %c0_i32 = arith.constant 0 : i32
    %c0_i32_0 = arith.constant 0 : i32
    %c0_i32_1 = arith.constant 0 : i32
    return %arg0, %c0_i32, %c0_i32_0 : i32, i32, i32
  }
  func.func @transform_1(%arg0: i32, %arg1: memref<2xi32, #tpu.memory_space<smem>>) -> (i32, i32) {
    %c0_i32 = arith.constant 0 : i32
    %c0_i32_0 = arith.constant 0 : i32
    %c0_i32_1 = arith.constant 0 : i32
    return %c0_i32, %c0_i32_0 : i32, i32
  }
  func.func @transform_2(%arg0: i32, %arg1: memref<2xi32, #tpu.memory_space<smem>>) -> (i32, i32) {
    %c0_i32 = arith.constant 0 : i32
    %c0_i32_0 = arith.constant 0 : i32
    %c0_i32_1 = arith.constant 0 : i32
    return %c0_i32, %c0_i32_0 : i32, i32
  }
  func.func @transform_3(%arg0: i32, %arg1: memref<2xi32, #tpu.memory_space<smem>>) -> (i32, i32) {
    %c0_i32 = arith.constant 0 : i32
    %c0_i32_0 = arith.constant 0 : i32
    %c0_i32_1 = arith.constant 0 : i32
    return %c0_i32, %c0_i32_0 : i32, i32
  }
  func.func @transform_4(%arg0: i32, %arg1: memref<2xi32, #tpu.memory_space<smem>>) -> (i32, i32) {
    %c0_i32 = arith.constant 0 : i32
    %c0_i32_0 = arith.constant 0 : i32
    %c0_i32_1 = arith.constant 0 : i32
    return %c0_i32, %c0_i32_0 : i32, i32
  }
  func.func @transform_5(%arg0: i32, %arg1: memref<2xi32, #tpu.memory_space<smem>>) -> (i32, i32, i32) {
    %c0_i32 = arith.constant 0 : i32
    %c0_i32_0 = arith.constant 0 : i32
    %c0_i32_1 = arith.constant 0 : i32
    return %arg0, %c0_i32, %c0_i32_0 : i32, i32, i32
  }
}

</mosaic_0001>

<llo_original>
// kernel: tile.18
$region0: #{tile.18}
  %s0 = inlined_call_operand.vmem [shape: f32[2,4,32], index: 0, kind: input, shape index: {}]
  %s1 = inlined_call_operand.vmem [shape: f32[2,128], index: 1, kind: output, shape index: {}]
  $region1: #{tile.18} parent=0
    #allocation0 [shape = 'u8[4096]{0}', space=vmem, size = 0x1000, scoped, tag = 'scoped mem for output reshape']
    #allocation1 [shape = 'u8[8192]{0}', space=vmem, size = 0x2000, scoped, tag = 'scoped mem for input reshape']
    %s3 = ssub.s32 16, 1
    %s4 = scalar_lea.vmem %s0, 4
    %v5 = vld [vmem:[%s4] sm:%s3]
    %s6 = scalar_lea.vmem [#allocation1], 8
    %7 = vst [vmem:[%s6] sm:%s3] %v5
    %v8 = vld [vmem:[%s0] sm:%s3]
    %9 = vst [vmem:[#allocation1] sm:%s3] %v8
    %s10 = smov 3
    %v11 = vld [vmem:[#allocation1] ss:$8 sm:%s10]
    %vm12 = vcmask 261120
    %13 = vst.msk [vmem:[#allocation0] sm:$0x3] %vm12, %v11
    %s14 = scalar_lea.vmem [#allocation1], 3
    %s15 = smov 3
    %v16 = vld [vmem:[%s14] ss:$8 sm:%s15]
    %17 = vrot.lane.b32.xlu0 %v16, 96
    %v18 = vpop.permute.xlu0 %17
    %vm19 = vcmask 1048320
    %20 = vst.msk [vmem:[#allocation0] sm:$0x3] %vm19, %v18
    %s21 = scalar_lea.vmem [#allocation1], 2
    %s22 = smov 3
    %v23 = vld [vmem:[%s21] ss:$8 sm:%s22]
    %24 = vrot.lane.b32.xlu0 %v23, 64
    %v25 = vpop.permute.xlu0 %24
    %vm26 = vcmask 785920
    %27 = vst.msk [vmem:[#allocation0] sm:$0x3] %vm26, %v25
    %s28 = scalar_lea.vmem [#allocation1], 1
    %s29 = smov 3
    %v30 = vld [vmem:[%s28] ss:$8 sm:%s29]
    %31 = vrot.lane.b32.xlu0 %v30, 32
    %v32 = vpop.permute.xlu0 %31
    %vm33 = vcmask 523520
    %34 = vst.msk [vmem:[#allocation0] sm:$0x3] %vm33, %v32
    %s36 = ssub.s32 4, 1
    %v37 = vld [vmem:[#allocation0] sm:%s36]
    %s39 = ssub.s32 4, 1
    %40 = vst [vmem:[%s1] sm:%s39] %v37

// kernel: se_layer.1
$region0: #{se_layer.1}
  #allocation0 [shape = 'u32[]', space=smem, size = 0x4, offset = 0x4, fixed_abs, tag = 'smem constant byte address 0x4 - core index']
  #allocation1 [shape = 'u32[72,128]{1,0:T(1,128)}', space=vmem, size = 0x9000, scoped, tag = 'internal scratch']
  #allocation2 [shape = 's32[1]{0}', space=sflag, size = 0x4, scoped, tag = 'scoped memory for se_layer.1']
  #allocation3 [shape = 'u8[512]{0}', space=smem, size = 0x200, scoped, tag = 'prefetched SMEM operand 0']
  %s0 = inlined_call_operand.vmem [shape: s32[2], index: 0, kind: input, shape index: {}]
  %s1 = inlined_call_operand.vmem [shape: f32[2,16,128], index: 1, kind: input, shape index: {}]
  %s2 = inlined_call_operand.vmem [shape: f32[2,128], index: 2, kind: input, shape index: {}]
  %s3 = inlined_call_operand.vmem [shape: f32[2,1], index: 3, kind: input, shape index: {}]
  %s4 = inlined_call_operand.vmem [shape: f32[2,128], index: 4, kind: input, shape index: {}]
  %s5 = inlined_call_operand.vmem [shape: f32[1,128], index: 5, kind: input, shape index: {}]
  %s6 = inlined_call_operand.vmem [shape: f32[2,16,128], index: 6, kind: output, shape index: {}]
  %s7 = sld [smem:[#allocation0]]
  $region53: #{se_layer.1} parent=0
    _
  %s9 = ssub.s32 1, %s7
  %s10 = scalar_select 0, %s9, %s7
  %s12 = sshll.u32 %s0, 4
  %s13 = int_to_ptr.vmem [resolvable:$true] %s12
  %15 = dma.vmem_to_smem %s13, 16, [#allocation3], [#allocation2]
  %17 = dma.done [#allocation2], 16
  %18 = sfence
  loop: start=0, step=1, limit=4
  $region2: #{se_layer.1} parent=0 // loop_pre_header
    _
  $region3: #{se_layer.1} parent=0 // loop_header
    %s20 = sphi 0, %s24
    %p21 = scmp.ge.s32.totalorder %s20, 4
    %s30 = sphi 0, %s32
    %s33 = sphi 0, %s30
    %s34 = sphi 0, %s33
    %s50 = sphi 0, %s34
    %s54 = sphi 0, %s54
    %s56 = sphi 0, %s54
    %s57 = sphi 0, %s56
    %s71 = sphi 0, %s57
    %s75 = sphi 0, %s75
    %s77 = sphi 0, %s75
    %s78 = sphi 0, %s77
    %s92 = sphi 0, %s78
    %s96 = sphi 0, %s96
    %s98 = sphi 0, %s96
    %s99 = sphi 0, %s98
    %s113 = sphi 0, %s99
    %s117 = sphi 0, %s117
    %s119 = sphi 0, %s117
    %s120 = sphi 0, %s119
    %s134 = sphi 0, %s120
    %s140 = sphi 0, %s142
    %s143 = sphi 0, %s140
    %s144 = sphi 0, %s143
    %s160 = sphi 0, %s144
  $region4: #{se_layer.1} parent=0 // loop_header_branch
    %23 = sbr.rel (%p21) target = $region8
  $region5: #{se_layer.1} parent=0 // loop_body
    %s25 = ssub.s32 %s20, 1
    %s26 = ssub.s32 %s20, 2
    %s27 = sadd.s32 %s20, 1
    %s28 = ssub.s32 %s20, %s27
    %p29 = scmp.eq.s32.totalorder %s28, 0
    %s31 = sadd.s32 %s30, 1
    %s32 = scalar_select %p29, %s30, %s31
    %p35 = pneg %p29
    %p36 = scmp.eq.s32.totalorder %s20, 1
    %p37 = por %p35, %p36
    %p38 = scmp.ne.s32.totalorder %s30, %s33
    %p39 = scmp.eq.s32.totalorder %s20, 0
    %p40 = por %p38, %p39
    %p41 = scmp.ne.s32.totalorder %s30, %s33
    %p42 = scmp.eq.s32.totalorder %s25, 1
    %p43 = por %p41, %p42
    %p44 = scmp.ne.s32.totalorder %s33, %s34
    %p45 = scmp.eq.s32.totalorder %s25, 0
    %p46 = por %p44, %p45
    %p47 = scmp.ne.s32.totalorder %s33, %s34
    %p48 = scmp.eq.s32.totalorder %s26, 1
    %p49 = por %p47, %p48
    %p51 = scmp.ne.s32.totalorder %s34, %s50
    %p52 = scmp.eq.s32.totalorder %s26, 0
    %p53 = por %p51, %p52
    %s55 = sadd.s32 %s54, 1
    %p58 = scmp.eq.s32.totalorder %s20, 1
    %p59 = scmp.ne.s32.totalorder %s54, %s56
    %p60 = scmp.eq.s32.totalorder %s20, 0
    %p61 = por %p59, %p60
    %p62 = scmp.ne.s32.totalorder %s54, %s56
    %p63 = scmp.eq.s32.totalorder %s25, 1
    %p64 = por %p62, %p63
    %p65 = scmp.ne.s32.totalorder %s56, %s57
    %p66 = scmp.eq.s32.totalorder %s25, 0
    %p67 = por %p65, %p66
    %p68 = scmp.ne.s32.totalorder %s56, %s57
    %p69 = scmp.eq.s32.totalorder %s26, 1
    %p70 = por %p68, %p69
    %p72 = scmp.ne.s32.totalorder %s57, %s71
    %p73 = scmp.eq.s32.totalorder %s26, 0
    %p74 = por %p72, %p73
    %s76 = sadd.s32 %s75, 1
    %p79 = scmp.eq.s32.totalorder %s20, 1
    %p80 = scmp.ne.s32.totalorder %s75, %s77
    %p81 = scmp.eq.s32.totalorder %s20, 0
    %p82 = por %p80, %p81
    %p83 = scmp.ne.s32.totalorder %s75, %s77
    %p84 = scmp.eq.s32.totalorder %s25, 1
    %p85 = por %p83, %p84
    %p86 = scmp.ne.s32.totalorder %s77, %s78
    %p87 = scmp.eq.s32.totalorder %s25, 0
    %p88 = por %p86, %p87
    %p89 = scmp.ne.s32.totalorder %s77, %s78
    %p90 = scmp.eq.s32.totalorder %s26, 1
    %p91 = por %p89, %p90
    %p93 = scmp.ne.s32.totalorder %s78, %s92
    %p94 = scmp.eq.s32.totalorder %s26, 0
    %p95 = por %p93, %p94
    %s97 = sadd.s32 %s96, 1
    %p100 = scmp.eq.s32.totalorder %s20, 1
    %p101 = scmp.ne.s32.totalorder %s96, %s98
    %p102 = scmp.eq.s32.totalorder %s20, 0
    %p103 = por %p101, %p102
    %p104 = scmp.ne.s32.totalorder %s96, %s98
    %p105 = scmp.eq.s32.totalorder %s25, 1
    %p106 = por %p104, %p105
    %p107 = scmp.ne.s32.totalorder %s98, %s99
    %p108 = scmp.eq.s32.totalorder %s25, 0
    %p109 = por %p107, %p108
    %p110 = scmp.ne.s32.totalorder %s98, %s99
    %p111 = scmp.eq.s32.totalorder %s26, 1
    %p112 = por %p110, %p111
    %p114 = scmp.ne.s32.totalorder %s99, %s113
    %p115 = scmp.eq.s32.totalorder %s26, 0
    %p116 = por %p114, %p115
    %s118 = sadd.s32 %s117, 1
    %p121 = scmp.eq.s32.totalorder %s20, 1
    %p122 = scmp.ne.s32.totalorder %s117, %s119
    %p123 = scmp.eq.s32.totalorder %s20, 0
    %p124 = por %p122, %p123
    %p125 = scmp.ne.s32.totalorder %s117, %s119
    %p126 = scmp.eq.s32.totalorder %s25, 1
    %p127 = por %p125, %p126
    %p128 = scmp.ne.s32.totalorder %s119, %s120
    %p129 = scmp.eq.s32.totalorder %s25, 0
    %p130 = por %p128, %p129
    %p131 = scmp.ne.s32.totalorder %s119, %s120
    %p132 = scmp.eq.s32.totalorder %s26, 1
    %p133 = por %p131, %p132
    %p135 = scmp.ne.s32.totalorder %s120, %s134
    %p136 = scmp.eq.s32.totalorder %s26, 0
    %p137 = por %p135, %p136
    %s138 = ssub.s32 %s20, %s27
    %p139 = scmp.eq.s32.totalorder %s138, 0
    %s141 = sadd.s32 %s140, 1
    %s142 = scalar_select %p139, %s140, %s141
    %p145 = pneg %p139
    %p146 = scmp.eq.s32.totalorder %s20, 1
    %p147 = por %p145, %p146
    %p148 = scmp.ne.s32.totalorder %s140, %s143
    %p149 = scmp.eq.s32.totalorder %s20, 0
    %p150 = por %p148, %p149
    %p151 = scmp.ne.s32.totalorder %s140, %s143
    %p152 = scmp.eq.s32.totalorder %s25, 1
    %p153 = por %p151, %p152
    %p154 = scmp.ne.s32.totalorder %s143, %s144
    %p155 = scmp.eq.s32.totalorder %s25, 0
    %p156 = por %p154, %p155
    %p157 = scmp.ne.s32.totalorder %s143, %s144
    %p158 = scmp.eq.s32.totalorder %s26, 1
    %p159 = por %p157, %p158
    %p161 = scmp.ne.s32.totalorder %s144, %s160
    %p162 = scmp.eq.s32.totalorder %s26, 0
    %p163 = por %p161, %p162
    %p164 = scmp.le.s32.totalorder 1, %s20
    %p165 = scmp.lt.s32.totalorder %s20, 3
    %p166 = pnand %p164, %p165
    %p167 = pneg %p166
    // Predicated region
    $region9: #{se_layer.1} parent=5 // pred_check
      _
    $region10: #{se_layer.1} parent=5 // pred_check_branch
      %169 = sbr.rel (%p166) target = $region12
    $region11: #{se_layer.1} parent=5 // pred_region
      %s170 = ssub.s32 %s20, 1
      // Predicated region
      $region13: #{se_layer.1} parent=11 // pred_check
        %p171 = pneg %p67
      $region14: #{se_layer.1} parent=11 // pred_check_branch
        %173 = sbr.rel (%p171) target = $region16
      $region15: #{se_layer.1} parent=11 // pred_region
        _
      $region16: #{se_layer.1} parent=11 // pred_fallthru
        _
      // Predicated region
      $region17: #{se_layer.1} parent=11 // pred_check
        %p174 = pneg %p88
      $region18: #{se_layer.1} parent=11 // pred_check_branch
        %176 = sbr.rel (%p174) target = $region20
      $region19: #{se_layer.1} parent=11 // pred_region
        _
      $region20: #{se_layer.1} parent=11 // pred_fallthru
        _
      // Predicated region
      $region21: #{se_layer.1} parent=11 // pred_check
        %p177 = pneg %p109
      $region22: #{se_layer.1} parent=11 // pred_check_branch
        %179 = sbr.rel (%p177) target = $region24
      $region23: #{se_layer.1} parent=11 // pred_region
        _
      $region24: #{se_layer.1} parent=11 // pred_fallthru
        _
      // Predicated region
      $region25: #{se_layer.1} parent=11 // pred_check
        %p180 = pneg %p130
      $region26: #{se_layer.1} parent=11 // pred_check_branch
        %182 = sbr.rel (%p180) target = $region28
      $region27: #{se_layer.1} parent=11 // pred_region
        _
      $region28: #{se_layer.1} parent=11 // pred_fallthru
        _
    $region12: #{se_layer.1} parent=5 // pred_fallthru
      _
    %p183 = scmp.lt.s32.totalorder %s20, 2
    // Predicated region
    $region29: #{se_layer.1} parent=5 // pred_check
      %p184 = pneg %p183
    $region30: #{se_layer.1} parent=5 // pred_check_branch
      %186 = sbr.rel (%p184) target = $region32
    $region31: #{se_layer.1} parent=5 // pred_region
      // Predicated region
      $region33: #{se_layer.1} parent=31 // pred_check
        %p187 = pneg %p40
      $region34: #{se_layer.1} parent=31 // pred_check_branch
        %189 = sbr.rel (%p187) target = $region36
      $region35: #{se_layer.1} parent=31 // pred_region
        %p190 = scmp.lt.s32.totalorder %s20, 1
        %s191 = scalar_select %p190, %s20, 1
        %s192 = smul.addr %s191, 2
        %s193 = smul.addr %s192, 8
        %s194 = scalar_lea.vmem %s1, %s193
      $region36: #{se_layer.1} parent=31 // pred_fallthru
        _
    $region32: #{se_layer.1} parent=5 // pred_fallthru
      _
    %p195 = scmp.le.s32.totalorder 1, %s20
    %p196 = scmp.lt.s32.totalorder %s20, 3
    %p197 = pnand %p195, %p196
    %p198 = pneg %p197
    // Predicated region
    $region37: #{se_layer.1} parent=5 // pred_check
      _
    $region38: #{se_layer.1} parent=5 // pred_check_branch
      %200 = sbr.rel (%p197) target = $region40
    $region39: #{se_layer.1} parent=5 // pred_region
      %s201 = ssub.s32 %s20, 1
      %p202 = scmp.lt.s32.totalorder %s25, 1
      %s203 = scalar_select %p202, %s25, 1
      %s204 = smul.addr %s203, 2
      %s205 = smul.addr %s204, 8
      %s206 = scalar_lea.vmem %s1, %s205
      %p207 = pneg %p46
      %p208 = pneg %p43
      %p209 = pneg %p67
      %p210 = pneg %p64
      %p211 = pneg %p88
      %p212 = pneg %p85
      %p213 = pneg %p109
      %p214 = pneg %p106
      %p215 = pneg %p130
      %p216 = pneg %p127
      %p217 = pneg %p156
      %p218 = pneg %p153
      %p219 = scmp.lt.s32.totalorder %s25, 1
      %s220 = scalar_select %p219, %s25, 1
      %s221 = smul.addr %s220, 2
      %s222 = smul.addr %s221, 8
      %s223 = scalar_lea.vmem %s6, %s222
      %p224 = scmp.lt.s32.totalorder %s25, 1
      %s225 = scalar_select %p224, %s25, 1
      %s226 = smul.addr %s225, 2
      %s227 = smul.addr %s226, 8
      %s228 = scalar_lea.vmem %s1, %s227
      %p229 = scmp.lt.s32.totalorder %s25, 1
      %s230 = scalar_select %p229, %s25, 1
      %s231 = smul.addr %s230, 2
      %s232 = smul.addr %s231, 8
      %s233 = scalar_lea.vmem %s6, %s232
      %v234 = vld [vmem:[%s228] sm:$0xff]
      %v235 = vld [vmem:[%s228 + $0x8] sm:$0xff]
      %v236 = vadd.f32 %v234, %v235
      %v237 = vrot.slane %v236, 4
      %v238 = vadd.f32 %v236, %v237
      %v239 = vrot.slane %v238, 2
      %v240 = vadd.f32 %v238, %v239
      %v241 = vrot.slane %v240, 1
      %v242 = vadd.f32 %v240, %v241
      %v243 = vadd.f32 %v242, 0.0
      %s244 = sld [smem:[#allocation3 + %s25]]
      %p245 = scmp.gt.s32.totalorder %s244, 1
      %s246 = scalar_select %p245, %s244, 1
      %s247 = scvt.s32.f32 %s246
      %v248 = vstv %s247
      %v249 = vrcp.pop %v248
      %v250 = vmul.f32 %v248, %v249
      %v251 = vsub.f32 1.0, %v250
      %v252 = vmul.f32 %v249, %v251
      %v253 = vadd.f32 %v249, %v252
      %vm254 = vweird.f32 %v248
      %vm255 = vweird.f32 %v249
      %vm256 = vmor %vm254, %vm255
      %v257 = vsel %vm256, %v249, %v253
      %v258 = vand.u32 2147483647, %v248
      %vm259 = vcmp.eq.f32.partialorder %v258, 8.507059e+37
      %v260 = vand.u32 %v248, 2147483648
      %v261 = vor.u32 1.1754944e-38, %v260
      %v262 = vsel %vm259, %v261, %v257
      %s263 = vtos %v262
      %v264 = vld [vmem:[%s2] sm:$0x3]
      %v265 = vmul.f32 %v243, %v264
      %vm266 = vcmask 1041408
      %v267 = vsel %vm266, %v265, 0.0
      %268 = vadd.xlane.f32.xlu0 %v267
      %v269 = vpop.xlane.xlu0 %268
      %v270 = vstv %s263
      %v271 = vmul.f32 %v269, %v270
      %v272 = vld [vmem:[%s3] sm:$0x3]
      %v273 = vadd.f32 %v271, %v272
      %v274 = vmax.f32 %v273, 0.0
      %v275 = vld [vmem:[%s4] sm:$0x3]
      %277 = vset.pattern.permute.xlu0 0
      %278 = vperm.xlu0 %277, %v274
      %v279 = vpop.permute.xlu0 %278
      %v281 = vmul.f32 %v279, %v275
      %v282 = vsel %vm266, %v281, 0.0
      %v283 = vrot.slane %v282, 4
      %v284 = vadd.f32 %v282, %v283
      %v285 = vrot.slane %v284, 2
      %v286 = vadd.f32 %v284, %v285
      %v287 = vrot.slane %v286, 1
      %v288 = vadd.f32 %v286, %v287
      %v289 = vld [vmem:[%s5] sm:$0x1]
      %v290 = vadd.f32 %v288, %v289
      %v291 = vxor.u32 %v290, 2147483648
      %v292 = vmul.f32 %v291, 1.442695
      %v293 = vpow.pop %v292
      %v294 = vadd.f32 %v293, 1.0
      %v295 = vrcp.pop %v294
      %v296 = vmul.f32 %v294, %v295
      %v297 = vsub.f32 1.0, %v296
      %v298 = vmul.f32 %v295, %v297
      %v299 = vadd.f32 %v295, %v298
      %vm300 = vweird.f32 %v294
      %vm301 = vweird.f32 %v295
      %vm302 = vmor %vm300, %vm301
      %v303 = vsel %vm302, %v295, %v299
      %v304 = vand.u32 2147483647, %v294
      %vm305 = vcmp.eq.f32.partialorder %v304, 8.507059e+37
      %v306 = vand.u32 %v294, 2147483648
      %v307 = vor.u32 1.1754944e-38, %v306
      %v308 = vsel %vm305, %v307, %v303
      %v309 = vmul.f32 1.0, %v308
      %v310 = vperm.slane %v309, 0
      %v311 = vmul.f32 %v234, %v310
      %v312 = vmul.f32 %v235, %v310
      %313 = vst [vmem:[%s233] sm:$0xff] %v311
      %314 = vst [vmem:[%s233 + $0x8] sm:$0xff] %v312
      %p315 = scmp.lt.s32.totalorder %s25, 1
      %s316 = scalar_select %p315, %s25, 1
      %s317 = smul.addr %s316, 2
      %s318 = smul.addr %s317, 8
      %s319 = scalar_lea.vmem %s6, %s318
      // Predicated region
      $region41: #{se_layer.1} parent=39 // pred_check
        %p320 = pneg %p153
      $region42: #{se_layer.1} parent=39 // pred_check_branch
        %322 = sbr.rel (%p320) target = $region44
      $region43: #{se_layer.1} parent=39 // pred_region
        _
      $region44: #{se_layer.1} parent=39 // pred_fallthru
        _
    $region40: #{se_layer.1} parent=5 // pred_fallthru
      _
    %p323 = scmp.le.s32.totalorder 2, %s20
    // Predicated region
    $region45: #{se_layer.1} parent=5 // pred_check
      %p324 = pneg %p323
    $region46: #{se_layer.1} parent=5 // pred_check_branch
      %326 = sbr.rel (%p324) target = $region48
    $region47: #{se_layer.1} parent=5 // pred_region
      %s327 = ssub.s32 %s20, 2
      // Predicated region
      $region49: #{se_layer.1} parent=47 // pred_check
        %p328 = pneg %p159
      $region50: #{se_layer.1} parent=47 // pred_check_branch
        %330 = sbr.rel (%p328) target = $region52
      $region51: #{se_layer.1} parent=47 // pred_region
        %p331 = scmp.lt.s32.totalorder %s26, 1
        %s332 = scalar_select %p331, %s26, 1
        %s333 = smul.addr %s332, 2
        %s334 = smul.addr %s333, 8
        %s335 = scalar_lea.vmem %s6, %s334
      $region52: #{se_layer.1} parent=47 // pred_fallthru
        _
    $region48: #{se_layer.1} parent=5 // pred_fallthru
      _
  $region6: #{se_layer.1} parent=0 // loop_footer
    %s24 = sadd.s32 1, %s20
  $region7: #{se_layer.1} parent=0 // loop_footer_branch
    %19 = sbr.rel target = $region3
  $region8: #{se_layer.1} parent=0 // loop_exit
    _

</llo_original>
